<compile_context>
chip_gen: v7x
topology: tpu7x:2x2x1
jax: 0.10.0
libtpu: 0.0.40
codegen_flags: <defaults>
</compile_context>

<pallas_src>
import jax
import jax.numpy as jnp
from jax.experimental import pallas as pl
from jax.experimental.pallas import tpu as pltpu


def _round_up(x, m):
    return ((x + m - 1) // m) * m


def _cdiv(a, b):
    return (a + b - 1) // b


def grouped_ffn_kernel(x_ref, w1_ref, b1_ref, w2_ref, b2_ref, o_ref):
    """Fused GroupedFeedForward for one (folded) row tile.

    x_ref : (TR, Nf)   row tile of folded activations (input dtype)
    w1_ref: (Nf, Hf)   block-diagonal packed up-projection weights (compute dtype)
    b1_ref: (1, Hf)    up-projection bias (f32)
    w2_ref: (Hf, Nf)   block-diagonal packed down-projection weights (compute dtype)
    b2_ref: (1, Nf)    down-projection bias (f32)
    o_ref : (TR, Nf)   output row tile
    """
    # Cast in vregs (no-op for matching dtypes); avoids a standalone astype HBM pass.
    x = x_ref[...].astype(w1_ref.dtype)
    # Up projection: one dense MXU matmul, f32 accumulation.
    h = jnp.dot(x, w1_ref[...], preferred_element_type=jnp.float32)
    # Bias add + ReLU in f32 (Dropout p=0 is identity); v5e-safe (no bf16 VPU needed).
    h = jnp.maximum(h + b1_ref[...], 0.0)
    # Down projection: one dense MXU matmul, f32 accumulation.
    y = jnp.dot(h.astype(w2_ref.dtype), w2_ref[...], preferred_element_type=jnp.float32)
    y = y + b2_ref[...]
    # Single lane-dense (>=128 lanes), full-width, unmasked store.
    o_ref[...] = y.astype(o_ref.dtype)


def block_diag_pack(w):
    """(G, in_g, out_g) grouped weights -> (G*in_g, G*out_g) block-diagonal matrix."""
    G, ig, og = w.shape
    eye = jnp.eye(G, dtype=w.dtype)
    return jnp.einsum('gio,gh->giho', w, eye).reshape(G * ig, G * og)


def grouped_feed_forward(x, w1, b1, w2, b2, *, row_tile=2048, fold=None,
                         compute_dtype=jnp.float32, out_dtype=None):
    """x: (T, B, N). w1: (G, N/G, H/G), b1: (G, 1, H/G), w2: (G, H/G, N/G), b2: (G, 1, N/G)."""
    T, B, N = x.shape
    G, in_g, hid_g = w1.shape
    H = G * hid_g
    assert N == G * in_g
    assert w2.shape == (G, hid_g, in_g)
    assert b1.shape == (G, 1, hid_g) and b2.shape == (G, 1, in_g)
    out_dtype = x.dtype if out_dtype is None else out_dtype

    rows = T * B

    # ---- Row fold: make the lane (feature) dimension >= 128. -------------------------
    if fold is None:
        fold = max(1, _cdiv(128, N))          # N=64 -> fold=2 (128 lanes, K=128)
    rows_r = _round_up(rows, fold)            # fold needs rows % fold == 0
    x2 = x.reshape(rows, N)
    if rows_r != rows:
        x2 = jnp.pad(x2, ((0, rows_r - rows), (0, 0)))
    rows_f = rows_r // fold
    Nf, Hf = N * fold, H * fold
    x2f = x2.reshape(rows_f, Nf)              # free row-major re-view

    # ---- Tile sizing. -----------------------------------------------------------------
    eff_tile = min(_round_up(row_tile, 8), _round_up(rows_f, 8))
    if rows_f >= 16:
        # v7x megacore: keep >=2 grid steps so both TensorCores get work.
        eff_tile = min(eff_tile, _round_up(_cdiv(rows_f, 2), 8))
    rows_fp = _round_up(rows_f, eff_tile)
    if rows_fp != rows_f:
        # Padded rows produce garbage (bias+ReLU on zeros) but are sliced off below.
        x2f = jnp.pad(x2f, ((0, rows_fp - rows_f), (0, 0)))
    grid = rows_fp // eff_tile

    # ---- Pack grouped weights into (folded) block-diagonal dense matrices (once). ------
    w1bd = block_diag_pack(w1)                # (N, H)
    w2bd = block_diag_pack(w2)                # (H, N)
    if fold > 1:
        eyef = jnp.eye(fold, dtype=w1bd.dtype)
        w1bd = jnp.kron(eyef, w1bd)           # (Nf, Hf)
        w2bd = jnp.kron(eyef, w2bd)           # (Hf, Nf)
    w1bd = w1bd.astype(compute_dtype)
    w2bd = w2bd.astype(compute_dtype)
    b1f = jnp.tile(b1.reshape(1, H), (1, fold)).astype(jnp.float32)   # (1, Hf)
    b2f = jnp.tile(b2.reshape(1, N), (1, fold)).astype(jnp.float32)   # (1, Nf)

    # ---- Explicit VMEM budget (valid on v5e 16 MiB scoped default / v7x 64 MiB phys). --
    x_b = jnp.dtype(x.dtype).itemsize
    o_b = jnp.dtype(out_dtype).itemsize
    w_b = jnp.dtype(compute_dtype).itemsize
    vmem_bytes = (2 * eff_tile * Nf * x_b           # double-buffered input tiles
                  + 2 * eff_tile * Nf * o_b         # double-buffered output tiles
                  + 2 * Nf * Hf * w_b               # resident packed weights
                  + (Hf + Nf) * 4                   # biases (f32)
                  + eff_tile * Hf * 4               # f32 hidden intermediate
                  + eff_tile * Nf * max(w_b, 4))    # in-vreg cast / f32 result
    vmem_limit = int(min(max(int(1.5 * vmem_bytes), 4 << 20), 64 << 20))

    out2 = pl.pallas_call(
        grouped_ffn_kernel,
        out_shape=jax.ShapeDtypeStruct((rows_fp, Nf), out_dtype),
        grid=(grid,),
        in_specs=[
            pl.BlockSpec((eff_tile, Nf), lambda i: (i, 0)),
            # Constant index maps: weights/biases DMA'd once, stay resident in VMEM.
            pl.BlockSpec((Nf, Hf), lambda i: (0, 0)),
            pl.BlockSpec((1, Hf), lambda i: (0, 0)),
            pl.BlockSpec((Hf, Nf), lambda i: (0, 0)),
            pl.BlockSpec((1, Nf), lambda i: (0, 0)),
        ],
        out_specs=pl.BlockSpec((eff_tile, Nf), lambda i: (i, 0)),
        compiler_params=pltpu.CompilerParams(
            dimension_semantics=("parallel",),
            vmem_limit_bytes=vmem_limit,
        ),
    )(x2f, w1bd, b1f, w2bd, b2f)

    # Un-fold and strip padding.
    out = out2[:rows_f].reshape(rows_r, N)[:rows]
    return out.reshape(T, B, N)


def xavier_uniform(key, shape):
    # Matches torch.nn.init.xavier_uniform_ fan computation for a 3D (G, in, out) tensor:
    # fan_in = shape[1] * shape[2], fan_out = shape[0] * shape[2]
    fan_in = shape[1] * shape[2]
    fan_out = shape[0] * shape[2]
    bound = (6.0 / (fan_in + fan_out)) ** 0.5
    return jax.random.uniform(key, shape, jnp.float32, -bound, bound)


def reference_grouped_ffn(x, w1, b1, w2, b2):
    """Plain-JAX replica of GroupedFeedForward.forward (feat_shuffle=False, norm=None, p=0)."""
    T, B, N = x.shape
    G = w1.shape[0]
    r = x.reshape(T * B, G, -1).transpose(1, 0, 2)          # (G, R, N/G)
    h = jnp.einsum('grk,gko->gro', r, w1) + b1              # (G, R, H/G)
    h = h.transpose(1, 0, 2).reshape(T * B, -1)             # (R, H)
    h = jnp.maximum(h, 0.0)
    r2 = h.reshape(T * B, G, -1).transpose(1, 0, 2)         # (G, R, H/G)
    y = jnp.einsum('grk,gko->gro', r2, w2) + b2             # (G, R, N/G)
    y = y.transpose(1, 0, 2).reshape(T, B, N)
    return y


if __name__ == "__main__":
    T, B = 8, 2          # sequence length, batch
    dim = 64             # model dim (N)
    hidden = 128         # hidden dim (H)
    G = 8                # num_groups

    key = jax.random.PRNGKey(0)
    kx, kw1, kw2 = jax.random.split(key, 3)

    x = jax.random.normal(kx, (T, B, dim), jnp.float32)

    # GroupLinear parameters (use_bias=True; bias init to 0 as in reset_parameters)
    w1 = xavier_uniform(kw1, (G, dim // G, hidden // G))     # glt_up weights
    b1 = jnp.zeros((G, 1, hidden // G), jnp.float32)         # glt_up bias
    w2 = xavier_uniform(kw2, (G, hidden // G, dim // G))     # glt_down weights
    b2 = jnp.zeros((G, 1, dim // G), jnp.float32)            # glt_down bias

    # f32 path (reference-exact).
    out = jax.block_until_ready(grouped_feed_forward(x, w1, b1, w2, b2))
    ref = reference_grouped_ffn(x, w1, b1, w2, b2)
    assert out.shape == (T, B, dim)
    assert jnp.allclose(out, ref, atol=1e-5, rtol=1e-5), "f32 mismatch vs JAX reference"

    # bf16 compute path (v6e/v7x MXU), f32 accumulation; x is cast in-kernel.  Compare
    # against the reference evaluated on bf16-rounded inputs with a loosened tolerance.
    out_bf = jax.block_until_ready(
        grouped_feed_forward(x, w1, b1, w2, b2, compute_dtype=jnp.bfloat16))
    xr = x.astype(jnp.bfloat16).astype(jnp.float32)
    w1r = w1.astype(jnp.bfloat16).astype(jnp.float32)
    w2r = w2.astype(jnp.bfloat16).astype(jnp.float32)
    ref_bf = reference_grouped_ffn(xr, w1r, b1, w2r, b2)
    assert jnp.allclose(out_bf, ref_bf, atol=5e-2, rtol=5e-2), "bf16 mismatch vs JAX reference"

    # Ragged shape: exercises fold padding, row-tile padding and a multi-step grid.
    T2, B2 = 13, 3
    x2 = jax.random.normal(jax.random.PRNGKey(1), (T2, B2, dim), jnp.float32)
    out2 = jax.block_until_ready(grouped_feed_forward(x2, w1, b1, w2, b2))
    ref2 = reference_grouped_ffn(x2, w1, b1, w2, b2)
    assert out2.shape == (T2, B2, dim)
    assert jnp.allclose(out2, ref2, atol=1e-5, rtol=1e-5), "ragged f32 mismatch vs JAX reference"

    print("KERNEL_OK")
</pallas_src>

<mosaic_0001>
module attributes {stable_mosaic.version = 11 : i64} {
  func.func @grouped_ffn_kernel(%arg0: i32, %arg1: memref<8x128xf32, #tpu.memory_space<vmem>>, %arg2: memref<128x256xf32, #tpu.memory_space<vmem>>, %arg3: memref<1x256xf32, #tpu.memory_space<vmem>>, %arg4: memref<256x128xf32, #tpu.memory_space<vmem>>, %arg5: memref<1x128xf32, #tpu.memory_space<vmem>>, %arg6: memref<8x128xf32, #tpu.memory_space<vmem>>) attributes {dimension_semantics = [#tpu.dimension_semantics<parallel>], iteration_bounds = array<i64: 1>, scalar_prefetch = 0 : i64, scratch_operands = 0 : i64, tpu.core_type = #tpu.core_type<tc>, window_params = [{transform_indices = @transform_0, window_bounds = array<i64: 8, 128>}, {pipeline_mode = #tpu.pipeline_mode<synchronous>, transform_indices = @transform_1, window_bounds = array<i64: 128, 256>}, {pipeline_mode = #tpu.pipeline_mode<synchronous>, transform_indices = @transform_2, window_bounds = array<i64: 1, 256>}, {pipeline_mode = #tpu.pipeline_mode<synchronous>, transform_indices = @transform_3, window_bounds = array<i64: 256, 128>}, {pipeline_mode = #tpu.pipeline_mode<synchronous>, transform_indices = @transform_4, window_bounds = array<i64: 1, 128>}, {transform_indices = @transform_5, window_bounds = array<i64: 8, 128>}]} {
    %c0 = arith.constant 0 : index
    %c0_0 = arith.constant 0 : index
    %0 = vector.load %arg1[%c0, %c0_0] : memref<8x128xf32, #tpu.memory_space<vmem>>, vector<8x128xf32>
    %c0_1 = arith.constant 0 : index
    %c0_2 = arith.constant 0 : index
    %1 = vector.load %arg2[%c0_1, %c0_2] : memref<128x256xf32, #tpu.memory_space<vmem>>, vector<128x256xf32>
    %cst = arith.constant dense<0.000000e+00> : vector<8x256xf32>
    %2 = tpu.matmul %0, %1, %cst {dimension_numbers = #tpu.dot_dimension_numbers<[1], [0], [0], [1], [0, 0, 1, 1], [], []>} : vector<8x128xf32>, vector<128x256xf32>, vector<8x256xf32> -> vector<8x256xf32>
    %c0_3 = arith.constant 0 : index
    %c0_4 = arith.constant 0 : index
    %3 = vector.load %arg3[%c0_3, %c0_4] : memref<1x256xf32, #tpu.memory_space<vmem>>, vector<1x256xf32>
    %4 = vector.broadcast %3 : vector<1x256xf32> to vector<8x256xf32>
    %5 = arith.addf %2, %4 : vector<8x256xf32>
    %cst_5 = arith.constant 0.000000e+00 : f32
    %6 = vector.broadcast %cst_5 : f32 to vector<8x256xf32>
    %7 = arith.maximumf %5, %6 : vector<8x256xf32>
    %c0_6 = arith.constant 0 : index
    %c0_7 = arith.constant 0 : index
    %8 = vector.load %arg4[%c0_6, %c0_7] : memref<256x128xf32, #tpu.memory_space<vmem>>, vector<256x128xf32>
    %cst_8 = arith.constant dense<0.000000e+00> : vector<8x128xf32>
    %9 = tpu.matmul %7, %8, %cst_8 {dimension_numbers = #tpu.dot_dimension_numbers<[1], [0], [0], [1], [0, 0, 1, 1], [], []>} : vector<8x256xf32>, vector<256x128xf32>, vector<8x128xf32> -> vector<8x128xf32>
    %c0_9 = arith.constant 0 : index
    %c0_10 = arith.constant 0 : index
    %10 = vector.load %arg5[%c0_9, %c0_10] : memref<1x128xf32, #tpu.memory_space<vmem>>, vector<1x128xf32>
    %11 = vector.broadcast %10 : vector<1x128xf32> to vector<8x128xf32>
    %12 = arith.addf %9, %11 : vector<8x128xf32>
    %c0_11 = arith.constant 0 : index
    %c0_12 = arith.constant 0 : index
    %13 = vector.load %arg6[%c0_11, %c0_12] : memref<8x128xf32, #tpu.memory_space<vmem>>, vector<8x128xf32>
    tpu.vector_store %arg6[%c0_11, %c0_12], %12 {strides = array<i32>} : memref<8x128xf32, #tpu.memory_space<vmem>>, vector<8x128xf32>,
    return
  }
  func.func @transform_0(%arg0: i32) -> (i32, i32) {
    %c0_i32 = arith.constant 0 : i32
    %c0_i32_0 = arith.constant 0 : i32
    return %arg0, %c0_i32 : i32, i32
  }
  func.func @transform_1(%arg0: i32) -> (i32, i32) {
    %c0_i32 = arith.constant 0 : i32
    %c0_i32_0 = arith.constant 0 : i32
    %c0_i32_1 = arith.constant 0 : i32
    return %c0_i32, %c0_i32_0 : i32, i32
  }
  func.func @transform_2(%arg0: i32) -> (i32, i32) {
    %c0_i32 = arith.constant 0 : i32
    %c0_i32_0 = arith.constant 0 : i32
    %c0_i32_1 = arith.constant 0 : i32
    return %c0_i32, %c0_i32_0 : i32, i32
  }
  func.func @transform_3(%arg0: i32) -> (i32, i32) {
    %c0_i32 = arith.constant 0 : i32
    %c0_i32_0 = arith.constant 0 : i32
    %c0_i32_1 = arith.constant 0 : i32
    return %c0_i32, %c0_i32_0 : i32, i32
  }
  func.func @transform_4(%arg0: i32) -> (i32, i32) {
    %c0_i32 = arith.constant 0 : i32
    %c0_i32_0 = arith.constant 0 : i32
    %c0_i32_1 = arith.constant 0 : i32
    return %c0_i32, %c0_i32_0 : i32, i32
  }
  func.func @transform_5(%arg0: i32) -> (i32, i32) {
    %c0_i32 = arith.constant 0 : i32
    %c0_i32_0 = arith.constant 0 : i32
    return %arg0, %c0_i32 : i32, i32
  }
}

</mosaic_0001>

<llo_original>
// kernel: tpu_custom_call.1
$region0: #{tpu_custom_call.1}
  #allocation0 [shape = 'u32[]', space=smem, size = 0x4, offset = 0x4, fixed_abs, tag = 'smem constant byte address 0x4 - core index']
  #allocation1 [shape = 'u32[144,128]{1,0:T(1,128)}', space=vmem, size = 0x12000, scoped, tag = 'internal scratch']
  %s0 = inlined_call_operand.hbm [shape: f32[8,128], index: 0, kind: input, shape index: {}]
  %s1 = inlined_call_operand.hbm [shape: f32[128,256], index: 1, kind: input, shape index: {}]
  %s2 = inlined_call_operand.vmem [shape: f32[1,256], index: 2, kind: input, shape index: {}]
  %s3 = inlined_call_operand.hbm [shape: f32[256,128], index: 3, kind: input, shape index: {}]
  %s4 = inlined_call_operand.vmem [shape: f32[1,128], index: 4, kind: input, shape index: {}]
  %s5 = inlined_call_operand.hbm [shape: f32[8,128], index: 5, kind: output, shape index: {}]
  %s6 = sld [smem:[#allocation0]]
  $region42: #{tpu_custom_call.1} parent=0
    _
  %s8 = ssub.s32 1, %s6
  %s9 = scalar_select 0, %s8, %s6
  $region1: #{tpu_custom_call.1} parent=0
    #allocation2 [shape = 'u8[4096]{0}', space=vmem, size = 0x1000, scoped, tag = 'input window, operand 0, single buffered']
    #allocation3 [shape = 's32[1]{0}', space=sflag, size = 0x4, scoped, tag = 'scoped memory for tpu_custom_call.1']
    #allocation4 [shape = 's32[1]{0}', space=sflag, size = 0x4, scoped, tag = 'scoped memory for tpu_custom_call.1']
    #allocation5 [shape = 'u8[131072]{0}', space=vmem, size = 0x20000, scoped, tag = 'input window, operand 1, single buffered']
    #allocation6 [shape = 's32[1]{0}', space=sflag, size = 0x4, scoped, tag = 'scoped memory for tpu_custom_call.1']
    #allocation7 [shape = 'u8[131072]{0}', space=vmem, size = 0x20000, scoped, tag = 'input window, operand 3, single buffered']
    #allocation8 [shape = 'u8[4096]{0}', space=vmem, size = 0x1000, scoped, tag = 'output window, operand 0, single buffered']
    %10 = vsyncpa [#allocation3], 0
    %11 = vsyncpa [#allocation6], 0
    %12 = vsyncpa [#allocation4], 0
    // Predicated region
    $region2: #{tpu_custom_call.1} parent=1 // pred_check
      _
    $region3: #{tpu_custom_call.1} parent=1 // pred_check_branch
      %14 = sbr.rel (0) target = $region5
    $region4: #{tpu_custom_call.1} parent=1 // pred_region
      %s16 = ssub.s32 128, 128
      %17 = vsyncadd [#allocation3], %s16
      %s19 = sshll.u32 [#allocation2], 4
      %s20 = int_to_ptr.vmem [resolvable:$true] %s19
      %22 = dma.hbm_to_vmem [thread:$0]  %s0, 128, %s20, [#allocation3]
    $region5: #{tpu_custom_call.1} parent=1 // pred_fallthru
      _
    // Predicated region
    $region6: #{tpu_custom_call.1} parent=1 // pred_check
      _
    $region7: #{tpu_custom_call.1} parent=1 // pred_check_branch
      %24 = sbr.rel (0) target = $region9
    $region8: #{tpu_custom_call.1} parent=1 // pred_region
      %s26 = ssub.s32 4096, 4096
      %27 = vsyncadd [#allocation6], %s26
      %s28 = sshll.u32 [#allocation5], 4
      %s29 = int_to_ptr.vmem [resolvable:$true] %s28
      %34 = dma.hbm_to_vmem [thread:$0]  %s1, 4096, %s29, [#allocation6], 256, 256, 16
    $region9: #{tpu_custom_call.1} parent=1 // pred_fallthru
      _
    // Predicated region
    $region10: #{tpu_custom_call.1} parent=1 // pred_check
      _
    $region11: #{tpu_custom_call.1} parent=1 // pred_check_branch
      %36 = sbr.rel (0) target = $region13
    $region12: #{tpu_custom_call.1} parent=1 // pred_region
      _
    $region13: #{tpu_custom_call.1} parent=1 // pred_fallthru
      _
    // Predicated region
    $region14: #{tpu_custom_call.1} parent=1 // pred_check
      _
    $region15: #{tpu_custom_call.1} parent=1 // pred_check_branch
      %38 = sbr.rel (0) target = $region17
    $region16: #{tpu_custom_call.1} parent=1 // pred_region
      %s40 = ssub.s32 4096, 4096
      %41 = vsyncadd [#allocation6], %s40
      %s42 = sshll.u32 [#allocation7], 4
      %s43 = int_to_ptr.vmem [resolvable:$true] %s42
      %48 = dma.hbm_to_vmem [thread:$0]  %s3, 4096, %s43, [#allocation6], 128, 128, 8
    $region17: #{tpu_custom_call.1} parent=1 // pred_fallthru
      _
    // Predicated region
    $region18: #{tpu_custom_call.1} parent=1 // pred_check
      _
    $region19: #{tpu_custom_call.1} parent=1 // pred_check_branch
      %50 = sbr.rel (0) target = $region21
    $region20: #{tpu_custom_call.1} parent=1 // pred_region
      _
    $region21: #{tpu_custom_call.1} parent=1 // pred_fallthru
      _
    // Predicated region
    $region22: #{tpu_custom_call.1} parent=1 // pred_check
      _
    $region23: #{tpu_custom_call.1} parent=1 // pred_check_branch
      %52 = sbr.rel (0) target = $region25
    $region24: #{tpu_custom_call.1} parent=1 // pred_region
      %53 = dma.done [#allocation3], 128
    $region25: #{tpu_custom_call.1} parent=1 // pred_fallthru
      _
    // Predicated region
    $region26: #{tpu_custom_call.1} parent=1 // pred_check
      _
    $region27: #{tpu_custom_call.1} parent=1 // pred_check_branch
      %55 = sbr.rel (0) target = $region29
    $region28: #{tpu_custom_call.1} parent=1 // pred_region
      %56 = dma.done [#allocation6], 4096
    $region29: #{tpu_custom_call.1} parent=1 // pred_fallthru
      _
    // Predicated region
    $region30: #{tpu_custom_call.1} parent=1 // pred_check
      _
    $region31: #{tpu_custom_call.1} parent=1 // pred_check_branch
      %58 = sbr.rel (0) target = $region33
    $region32: #{tpu_custom_call.1} parent=1 // pred_region
      %59 = dma.done [#allocation6], 4096
    $region33: #{tpu_custom_call.1} parent=1 // pred_fallthru
      _
    %v60 = vld [vmem:[#allocation2] sm:$0xff]
    %v61 = vld [vmem:[#allocation5] sm:$0xff]
    %v62 = vld [vmem:[#allocation5 + $0x8] sm:$0xff]
    %v63 = vld [vmem:[#allocation5 + $0x10] sm:$0xff]
    %v64 = vld [vmem:[#allocation5 + $0x18] sm:$0xff]
    %v65 = vld [vmem:[#allocation5 + $0x20] sm:$0xff]
    %v66 = vld [vmem:[#allocation5 + $0x28] sm:$0xff]
    %v67 = vld [vmem:[#allocation5 + $0x30] sm:$0xff]
    %v68 = vld [vmem:[#allocation5 + $0x38] sm:$0xff]
    %v69 = vld [vmem:[#allocation5 + $0x40] sm:$0xff]
    %v70 = vld [vmem:[#allocation5 + $0x48] sm:$0xff]
    %v71 = vld [vmem:[#allocation5 + $0x50] sm:$0xff]
    %v72 = vld [vmem:[#allocation5 + $0x58] sm:$0xff]
    %v73 = vld [vmem:[#allocation5 + $0x60] sm:$0xff]
    %v74 = vld [vmem:[#allocation5 + $0x68] sm:$0xff]
    %v75 = vld [vmem:[#allocation5 + $0x70] sm:$0xff]
    %v76 = vld [vmem:[#allocation5 + $0x78] sm:$0xff]
    %v77 = vld [vmem:[#allocation5 + $0x80] sm:$0xff]
    %v78 = vld [vmem:[#allocation5 + $0x88] sm:$0xff]
    %v79 = vld [vmem:[#allocation5 + $0x90] sm:$0xff]
    %v80 = vld [vmem:[#allocation5 + $0x98] sm:$0xff]
    %v81 = vld [vmem:[#allocation5 + $0xa0] sm:$0xff]
    %v82 = vld [vmem:[#allocation5 + $0xa8] sm:$0xff]
    %v83 = vld [vmem:[#allocation5 + $0xb0] sm:$0xff]
    %v84 = vld [vmem:[#allocation5 + $0xb8] sm:$0xff]
    %v85 = vld [vmem:[#allocation5 + $0xc0] sm:$0xff]
    %v86 = vld [vmem:[#allocation5 + $0xc8] sm:$0xff]
    %v87 = vld [vmem:[#allocation5 + $0xd0] sm:$0xff]
    %v88 = vld [vmem:[#allocation5 + $0xd8] sm:$0xff]
    %v89 = vld [vmem:[#allocation5 + $0xe0] sm:$0xff]
    %v90 = vld [vmem:[#allocation5 + $0xe8] sm:$0xff]
    %v91 = vld [vmem:[#allocation5 + $0xf0] sm:$0xff]
    %v92 = vld [vmem:[#allocation5 + $0xf8] sm:$0xff]
    %v93 = vld [vmem:[%s2] sm:$0x3]
    %v95 = vlaneseq
    %v96 = vshrl.u32 %v95, 7
    %v97 = vsub.s32 0, %v96
    %v98 = vrot.slane %v93, %v97
    %v99 = vlaneseq
    %v100 = vshrl.u32 %v99, 7
    %v101 = vsub.s32 1, %v100
    %v102 = vrot.slane %v93, %v101
    %105 = vmatprep.subr.mxu0 %v62
    %106 = vmatpush1.msra.mxu0 %v61
    %107 = vmatprep.subr.mxu0 %v64
    %108 = vmatpush1.msra.mxu0 %v63
    %109 = vmatprep.subr.mxu0 %v66
    %110 = vmatpush1.msra.mxu0 %v65
    %111 = vmatprep.subr.mxu0 %v68
    %112 = vmatpush1.msra.mxu0 %v67
    %113 = vmatprep.subr.mxu0 %v70
    %114 = vmatpush1.msra.mxu0 %v69
    %115 = vmatprep.subr.mxu0 %v72
    %116 = vmatpush1.msra.mxu0 %v71
    %117 = vmatprep.subr.mxu0 %v74
    %118 = vmatpush1.msra.mxu0 %v73
    %119 = vmatprep.subr.mxu0 %v76
    %120 = vmatpush1.msra.mxu0 %v75
    %121 = vmatprep.subr.mxu0 %v78
    %122 = vmatpush1.msra.mxu0 %v77
    %123 = vmatprep.subr.mxu0 %v80
    %124 = vmatpush1.msra.mxu0 %v79
    %125 = vmatprep.subr.mxu0 %v82
    %126 = vmatpush1.msra.mxu0 %v81
    %127 = vmatprep.subr.mxu0 %v84
    %128 = vmatpush1.msra.mxu0 %v83
    %129 = vmatprep.subr.mxu0 %v86
    %130 = vmatpush1.msra.mxu0 %v85
    %131 = vmatprep.subr.mxu0 %v88
    %132 = vmatpush1.msra.mxu0 %v87
    %133 = vmatprep.subr.mxu0 %v90
    %134 = vmatpush1.msra.mxu0 %v89
    %135 = vmatprep.subr.mxu0 %v92
    %136 = vmatpush1.msra.mxu0 %v91
    %137 = vmatprep.subr.mxu0 0.0
    %138 = vmatpush1.msra.mxu0 0.0
    %139 = vmatprep.subr.mxu0 0.0
    %140 = vmatpush1.msra.mxu0 0.0
    %141 = vmatprep.subr.mxu0 0.0
    %142 = vmatpush1.msra.mxu0 0.0
    %143 = vmatprep.subr.mxu0 0.0
    %144 = vmatpush1.msra.mxu0 0.0
    %145 = vmatprep.subr.mxu0 0.0
    %146 = vmatpush1.msra.mxu0 0.0
    %147 = vmatprep.subr.mxu0 0.0
    %148 = vmatpush1.msra.mxu0 0.0
    %149 = vmatprep.subr.mxu0 0.0
    %150 = vmatpush1.msra.mxu0 0.0
    %151 = vmatprep.subr.mxu0 0.0
    %152 = vmatpush1.msra.mxu0 0.0
    %153 = vmatprep.subr.mxu0 0.0
    %154 = vmatpush1.msra.mxu0 0.0
    %155 = vmatprep.subr.mxu0 0.0
    %156 = vmatpush1.msra.mxu0 0.0
    %157 = vmatprep.subr.mxu0 0.0
    %158 = vmatpush1.msra.mxu0 0.0
    %159 = vmatprep.subr.mxu0 0.0
    %160 = vmatpush1.msra.mxu0 0.0
    %161 = vmatprep.subr.mxu0 0.0
    %162 = vmatpush1.msra.mxu0 0.0
    %163 = vmatprep.subr.mxu0 0.0
    %164 = vmatpush1.msra.mxu0 0.0
    %165 = vmatprep.subr.mxu0 0.0
    %166 = vmatpush1.msra.mxu0 0.0
    %167 = vmatprep.subr.mxu0 0.0
    %168 = vmatpush1.msra.mxu0 0.0
    %169 = vmatprep.mubr.f32.mxu0 0.0
    %170 = vmatmul.mubr.f32.gmra.mrb[0].mxu0 %v60
    %v171 = vpop.f32.mrb[0].mxu0
    %v172 = vadd.f32 %v98, %v171
    %v173 = vpop.f32.mrb[0].mxu0
    %v174 = vadd.f32 %v102, %v173
    %175 = vdwg.mxu0
    %v176 = vmax.f32 %v172, 0.0
    %v177 = vmax.f32 %v174, 0.0
    %v178 = vld [vmem:[#allocation7] sm:$0xff]
    %v179 = vld [vmem:[#allocation7 + $0x8] sm:$0xff]
    %v180 = vld [vmem:[#allocation7 + $0x10] sm:$0xff]
    %v181 = vld [vmem:[#allocation7 + $0x18] sm:$0xff]
    %v182 = vld [vmem:[#allocation7 + $0x20] sm:$0xff]
    %v183 = vld [vmem:[#allocation7 + $0x28] sm:$0xff]
    %v184 = vld [vmem:[#allocation7 + $0x30] sm:$0xff]
    %v185 = vld [vmem:[#allocation7 + $0x38] sm:$0xff]
    %v186 = vld [vmem:[#allocation7 + $0x40] sm:$0xff]
    %v187 = vld [vmem:[#allocation7 + $0x48] sm:$0xff]
    %v188 = vld [vmem:[#allocation7 + $0x50] sm:$0xff]
    %v189 = vld [vmem:[#allocation7 + $0x58] sm:$0xff]
    %v190 = vld [vmem:[#allocation7 + $0x60] sm:$0xff]
    %v191 = vld [vmem:[#allocation7 + $0x68] sm:$0xff]
    %v192 = vld [vmem:[#allocation7 + $0x70] sm:$0xff]
    %v193 = vld [vmem:[#allocation7 + $0x78] sm:$0xff]
    %v194 = vld [vmem:[#allocation7 + $0x80] sm:$0xff]
    %v195 = vld [vmem:[#allocation7 + $0x88] sm:$0xff]
    %v196 = vld [vmem:[#allocation7 + $0x90] sm:$0xff]
    %v197 = vld [vmem:[#allocation7 + $0x98] sm:$0xff]
    %v198 = vld [vmem:[#allocation7 + $0xa0] sm:$0xff]
    %v199 = vld [vmem:[#allocation7 + $0xa8] sm:$0xff]
    %v200 = vld [vmem:[#allocation7 + $0xb0] sm:$0xff]
    %v201 = vld [vmem:[#allocation7 + $0xb8] sm:$0xff]
    %v202 = vld [vmem:[#allocation7 + $0xc0] sm:$0xff]
    %v203 = vld [vmem:[#allocation7 + $0xc8] sm:$0xff]
    %v204 = vld [vmem:[#allocation7 + $0xd0] sm:$0xff]
    %v205 = vld [vmem:[#allocation7 + $0xd8] sm:$0xff]
    %v206 = vld [vmem:[#allocation7 + $0xe0] sm:$0xff]
    %v207 = vld [vmem:[#allocation7 + $0xe8] sm:$0xff]
    %v208 = vld [vmem:[#allocation7 + $0xf0] sm:$0xff]
    %v209 = vld [vmem:[#allocation7 + $0xf8] sm:$0xff]
    %v210 = vld [vmem:[%s4] sm:$0x1]
    %v212 = vlaneseq
    %v213 = vshrl.u32 %v212, 7
    %v214 = vsub.s32 0, %v213
    %v215 = vrot.slane %v210, %v214
    %217 = vmatprep.subr.mxu0 0.0
    %218 = vmatpush1.msra.mxu0 %v178
    %219 = vmatprep.subr.mxu0 0.0
    %220 = vmatpush1.msra.mxu0 %v179
    %221 = vmatprep.subr.mxu0 0.0
    %222 = vmatpush1.msra.mxu0 %v180
    %223 = vmatprep.subr.mxu0 0.0
    %224 = vmatpush1.msra.mxu0 %v181
    %225 = vmatprep.subr.mxu0 0.0
    %226 = vmatpush1.msra.mxu0 %v182
    %227 = vmatprep.subr.mxu0 0.0
    %228 = vmatpush1.msra.mxu0 %v183
    %229 = vmatprep.subr.mxu0 0.0
    %230 = vmatpush1.msra.mxu0 %v184
    %231 = vmatprep.subr.mxu0 0.0
    %232 = vmatpush1.msra.mxu0 %v185
    %233 = vmatprep.subr.mxu0 0.0
    %234 = vmatpush1.msra.mxu0 %v186
    %235 = vmatprep.subr.mxu0 0.0
    %236 = vmatpush1.msra.mxu0 %v187
    %237 = vmatprep.subr.mxu0 0.0
    %238 = vmatpush1.msra.mxu0 %v188
    %239 = vmatprep.subr.mxu0 0.0
    %240 = vmatpush1.msra.mxu0 %v189
    %241 = vmatprep.subr.mxu0 0.0
    %242 = vmatpush1.msra.mxu0 %v190
    %243 = vmatprep.subr.mxu0 0.0
    %244 = vmatpush1.msra.mxu0 %v191
    %245 = vmatprep.subr.mxu0 0.0
    %246 = vmatpush1.msra.mxu0 %v192
    %247 = vmatprep.subr.mxu0 0.0
    %248 = vmatpush1.msra.mxu0 %v193
    %249 = vmatprep.subr.mxu0 0.0
    %250 = vmatpush1.msra.mxu0 %v194
    %251 = vmatprep.subr.mxu0 0.0
    %252 = vmatpush1.msra.mxu0 %v195
    %253 = vmatprep.subr.mxu0 0.0
    %254 = vmatpush1.msra.mxu0 %v196
    %255 = vmatprep.subr.mxu0 0.0
    %256 = vmatpush1.msra.mxu0 %v197
    %257 = vmatprep.subr.mxu0 0.0
    %258 = vmatpush1.msra.mxu0 %v198
    %259 = vmatprep.subr.mxu0 0.0
    %260 = vmatpush1.msra.mxu0 %v199
    %261 = vmatprep.subr.mxu0 0.0
    %262 = vmatpush1.msra.mxu0 %v200
    %263 = vmatprep.subr.mxu0 0.0
    %264 = vmatpush1.msra.mxu0 %v201
    %265 = vmatprep.subr.mxu0 0.0
    %266 = vmatpush1.msra.mxu0 %v202
    %267 = vmatprep.subr.mxu0 0.0
    %268 = vmatpush1.msra.mxu0 %v203
    %269 = vmatprep.subr.mxu0 0.0
    %270 = vmatpush1.msra.mxu0 %v204
    %271 = vmatprep.subr.mxu0 0.0
    %272 = vmatpush1.msra.mxu0 %v205
    %273 = vmatprep.subr.mxu0 0.0
    %274 = vmatpush1.msra.mxu0 %v206
    %275 = vmatprep.subr.mxu0 0.0
    %276 = vmatpush1.msra.mxu0 %v207
    %277 = vmatprep.subr.mxu0 0.0
    %278 = vmatpush1.msra.mxu0 %v208
    %279 = vmatprep.subr.mxu0 0.0
    %280 = vmatpush1.msra.mxu0 %v209
    %281 = vmatprep.mubr.f32.mxu0 %v177
    %282 = vmatmul.mubr.f32.gmra.mrb[0].mxu0 %v176
    %v283 = vpop.f32.mrb[0].mxu0
    %v284 = vadd.f32 %v215, %v283
    %v285 = vpop.f32.mrb[0].mxu0
    %286 = vdwg.mxu0
    %287 = vst [vmem:[#allocation8] sm:$0xff] %v284
    // Predicated region
    $region34: #{tpu_custom_call.1} parent=1 // pred_check
      _
    $region35: #{tpu_custom_call.1} parent=1 // pred_check_branch
      %289 = sbr.rel (0) target = $region37
    $region36: #{tpu_custom_call.1} parent=1 // pred_region
      %s291 = ssub.s32 128, 128
      %292 = vsyncadd [#allocation4], %s291
      %s294 = sshll.u32 [#allocation8], 4
      %s295 = int_to_ptr.vmem [resolvable:$true] %s294
      %297 = dma.vmem_to_hbm [thread:$0]  %s295, 128, %s5, [#allocation4]
    $region37: #{tpu_custom_call.1} parent=1 // pred_fallthru
      _
    // Predicated region
    $region38: #{tpu_custom_call.1} parent=1 // pred_check
      _
    $region39: #{tpu_custom_call.1} parent=1 // pred_check_branch
      %299 = sbr.rel (0) target = $region41
    $region40: #{tpu_custom_call.1} parent=1 // pred_region
      %300 = dma.done [#allocation4], 128
    $region41: #{tpu_custom_call.1} parent=1 // pred_fallthru
      _
    %301 = vsyncpa [#allocation3], 1
    %302 = vsyncpa [#allocation6], 1
    %303 = vsyncpa [#allocation4], 1

</llo_original>
